<compile_context>
chip_gen: v5e
topology: v5e:2x2
jax: 0.10.0
libtpu: 0.0.40
codegen_flags: <defaults>
</compile_context>

<pallas_src>
import jax
import jax.numpy as jnp
import numpy as np
from jax.experimental import pallas as pl
from jax.experimental.pallas import tpu as pltpu


# ---------------------------------------------------------------------------
# pltpu.roll shift-convention probe (run once, outside jit).  Makes the kernel
# robust to either rotation direction of the underlying TPU rotate op.
# ---------------------------------------------------------------------------
_ROLL_SIGN = None


def _roll_sign():
    """+1 if pltpu.roll follows np.roll (positive shift moves data to higher indices)."""
    global _ROLL_SIGN
    if _ROLL_SIGN is None:
        def kernel(x_ref, o_ref):
            o_ref[...] = pltpu.roll(x_ref[...], 1, axis=1)

        x = jax.lax.broadcasted_iota(jnp.float32, (8, 128), 1)
        out = pl.pallas_call(
            kernel, out_shape=jax.ShapeDtypeStruct((8, 128), jnp.float32))(x)
        _ROLL_SIGN = 1 if float(out[0, 0]) > 64.0 else -1
    return _ROLL_SIGN


# ---------------------------------------------------------------------------
# Fused residual-block kernel
# ---------------------------------------------------------------------------
def _tap_layout(stride):
    """(phase_index, row_shift, col_shift) for the 9 taps of a 3x3 / pad-1 conv."""
    def split(t):                               # kernel tap coordinate t in {0, 1, 2}
        if stride == 1:
            return 0, t - 1                     # single phase, shift by t - 1
        return ((1, -1), (0, 0), (1, 0))[t]     # stride 2: (phase parity, shift)

    taps = []
    for i in range(3):
        a, rs = split(i)
        for j in range(3):
            b, cs = split(j)
            taps.append((a * stride + b, rs, cs))
    return taps


def _make_res_block_kernel(stride, ho, wo, cout, roll_sign):
    p = ho * wo
    taps = _tap_layout(stride)
    assert wo & (wo - 1) == 0, "block output width must be a power of two"

    def kernel(x_ref, w1_ref, b1_ref, w2_ref, b2_ref, ws_ref, bs_ref, o_ref):
        # ---- shared boundary masks, built once from a single lane iota ----
        pos = jax.lax.broadcasted_iota(jnp.int32, (1, p), 1)
        col = jnp.bitwise_and(pos, wo - 1)
        row_ok = {-1: pos >= wo, 0: None, 1: pos < (ho - 1) * wo}
        col_ok = {-1: col >= 1, 0: None, 1: col <= wo - 2}
        mask = {}
        for rs in (-1, 0, 1):
            for cs in (-1, 0, 1):
                m, c = row_ok[rs], col_ok[cs]
                if m is None:
                    m = c
                elif c is not None:
                    m = jnp.logical_and(m, c)
                mask[(rs, cs)] = m              # None for the centre tap

        def shifted_tap(flat, rs, cs):
            """flat: (C, P) row-major flattening of a (ho, wo) image.

            Returns z with z[:, q] = flat[:, q + rs*wo + cs] where the source pixel
            lies inside the image and 0 elsewhere (zero-padded conv tap)."""
            k = rs * wo + cs
            if k != 0:
                flat = pltpu.roll(flat, (roll_sign * -k) % p, axis=1)
            m = mask[(rs, cs)]
            return flat if m is None else jnp.where(m, flat, 0.0)

        # Load each polyphase slice of this sample's input once.
        phase = {}
        for pi, _, _ in taps:
            if pi not in phase:
                phase[pi] = x_ref[0, pi, :, :]                  # (cin, p)

        # conv1 (BN scale pre-folded into w1): 3x3, stride `stride`, pad 1 -> +bias -> ReLU
        acc = jnp.broadcast_to(b1_ref[...], (cout, p)).astype(jnp.float32)
        for t, (pi, rs, cs) in enumerate(taps):
            tap = shifted_tap(phase[pi], rs, cs)
            acc = acc + jnp.dot(w1_ref[t], tap, preferred_element_type=jnp.float32)
        h = jnp.maximum(acc, 0.0)                               # (cout, p)

        # Projection shortcut: 1x1 conv (stride `stride`, pad 0, BN scale pre-folded).
        # Its input is exactly the unshifted centre tap of conv1 (channels change in every
        # encoder block, so the projection path is always taken).  The shortcut plus both
        # remaining biases seed conv2's accumulator, fusing the residual add.
        center = phase[taps[4][0]]                              # (cin, p)
        acc = (jnp.dot(ws_ref[...], center, preferred_element_type=jnp.float32)
               + (bs_ref[...] + b2_ref[...]))

        # conv2 (BN scale pre-folded into w2): 3x3, stride 1, pad 1 on h, then ReLU.
        for t in range(9):
            rs, cs = t // 3 - 1, t % 3 - 1
            tap = shifted_tap(h, rs, cs)
            acc = acc + jnp.dot(w2_ref[t], tap, preferred_element_type=jnp.float32)
        o_ref[0] = jnp.maximum(acc, 0.0).astype(o_ref.dtype)

    return kernel


# ---------------------------------------------------------------------------
# Wrapper: polyphase split (cheap, no expansion) + one pallas_call per block
# ---------------------------------------------------------------------------
def _polyphase_flatten(x, stride):
    """(N, C, H, W) -> (N, stride**2, C, (H//stride)*(W//stride))."""
    n, c, h, w = x.shape
    if stride == 1:
        return x.reshape(n, 1, c, h * w)        # pure metadata reshape, no data movement
    ph = jnp.stack([x[:, :, a::stride, b::stride]
                    for a in range(stride) for b in range(stride)], axis=1)
    return ph.reshape(n, stride * stride, c, (h // stride) * (w // stride))


def res_block(x, prm, stride, roll_sign):
    """x: (N, Cin, H, W) NCHW float32. Whole residual block in one Pallas kernel."""
    n, cin, h, w = x.shape
    cout = prm["w1"].shape[-1]
    ho, wo = h // stride, w // stride
    p = ho * wo

    phases = _polyphase_flatten(x, stride)
    nph = phases.shape[1]

    # Parameter-side plumbing only (tiny tensors, exact algebra): fold BN scale into the
    # conv weights and lay weights out (Cout, Cin) for (Cout,Cin)@(Cin,P) matmuls.
    w1 = prm["w1"] * prm["s1"]                                  # (3,3,cin,cout)*(cout,)
    w2 = prm["w2"] * prm["s2"]
    ws = prm["ws"] * prm["ss"]
    w1t = jnp.transpose(w1.reshape(9, cin, cout), (0, 2, 1))
    w2t = jnp.transpose(w2.reshape(9, cout, cout), (0, 2, 1))
    wst = jnp.transpose(ws.reshape(cin, cout), (1, 0))
    col = lambda v: v.reshape(cout, 1)

    kernel = _make_res_block_kernel(stride, ho, wo, cout, roll_sign)
    vec_spec = pl.BlockSpec((cout, 1), lambda b: (0, 0))
    out = pl.pallas_call(
        kernel,
        out_shape=jax.ShapeDtypeStruct((n, cout, p), x.dtype),
        grid=(n,),
        in_specs=[
            pl.BlockSpec((1, nph, cin, p), lambda b: (b, 0, 0, 0)),
            pl.BlockSpec((9, cout, cin), lambda b: (0, 0, 0)),
            vec_spec,
            pl.BlockSpec((9, cout, cout), lambda b: (0, 0, 0)),
            vec_spec,
            pl.BlockSpec((cout, cin), lambda b: (0, 0)),
            vec_spec,
        ],
        out_specs=pl.BlockSpec((1, cout, p), lambda b: (b, 0, 0)),
        compiler_params=pltpu.CompilerParams(dimension_semantics=("parallel",)),
        # TODO(synk): for large spatial inputs, tile P with a second grid axis and set
        # vmem_limit_bytes; at these sizes every block fits comfortably in VMEM.
    )(phases, w1t, col(prm["b1"]), w2t, col(prm["b2"]), wst, col(prm["bs"]))
    return out.reshape(n, cout, ho, wo)


def encoder_forward(x_nchw, params):
    sign = _roll_sign()   # cached python int (probe must have run outside jit)
    stem = res_block(x_nchw, params["stem"], 1, sign)
    d1 = res_block(stem, params["down1"], 2, sign)
    d2 = res_block(d1, params["down2"], 2, sign)
    return d2, [stem, d1, d2]


# ---------------------------------------------------------------------------
# Pure-JAX reference (for correctness check), NCHW, full-precision conv
# ---------------------------------------------------------------------------
def _conv_bn_ref(x, w, scale, bias, *, stride, pad, relu, residual=None):
    y = jax.lax.conv_general_dilated(
        x, w, (stride, stride), [(pad, pad), (pad, pad)],
        dimension_numbers=("NCHW", "HWIO", "NCHW"),
        precision=jax.lax.Precision.HIGHEST)
    y = y * scale.reshape(1, -1, 1, 1) + bias.reshape(1, -1, 1, 1)
    if residual is not None:
        y = y + residual
    return jnp.maximum(y, 0.0) if relu else y


def _res_block_ref(x, prm, stride):
    h = _conv_bn_ref(x, prm["w1"], prm["s1"], prm["b1"], stride=stride, pad=1, relu=True)
    skip = _conv_bn_ref(x, prm["ws"], prm["ss"], prm["bs"], stride=stride, pad=0, relu=False)
    return _conv_bn_ref(h, prm["w2"], prm["s2"], prm["b2"], stride=1, pad=1, relu=True,
                        residual=skip)


def encoder_forward_ref(x_nchw, params):
    stem = _res_block_ref(x_nchw, params["stem"], 1)
    d1 = _res_block_ref(stem, params["down1"], 2)
    d2 = _res_block_ref(d1, params["down2"], 2)
    return d2, [stem, d1, d2]


# ---------------------------------------------------------------------------
# Deterministic synthetic parameters (BatchNorm folded to scale/bias)
# ---------------------------------------------------------------------------
def _init_conv(key, kh, kw, cin, cout):
    return jax.random.normal(key, (kh, kw, cin, cout), jnp.float32) / np.sqrt(kh * kw * cin)


def _init_bn(key, c, eps=1e-5):
    k1, k2, k3, k4 = jax.random.split(key, 4)
    gamma = 1.0 + 0.1 * jax.random.normal(k1, (c,), jnp.float32)
    beta = 0.1 * jax.random.normal(k2, (c,), jnp.float32)
    mean = 0.1 * jax.random.normal(k3, (c,), jnp.float32)
    var = jax.random.uniform(k4, (c,), jnp.float32, minval=0.5, maxval=1.5)
    scale = gamma / jnp.sqrt(var + eps)
    bias = beta - mean * scale
    return scale, bias


def _init_res_block(key, cin, cout):
    ks = jax.random.split(key, 6)
    p = {}
    p["w1"] = _init_conv(ks[0], 3, 3, cin, cout)
    p["s1"], p["b1"] = _init_bn(ks[1], cout)
    p["w2"] = _init_conv(ks[2], 3, 3, cout, cout)
    p["s2"], p["b2"] = _init_bn(ks[3], cout)
    p["ws"] = _init_conv(ks[4], 1, 1, cin, cout)
    p["ss"], p["bs"] = _init_bn(ks[5], cout)
    return p


if __name__ == "__main__":
    in_channels, base_channel = 4, 8     # out_channels unused by the encoder forward
    H = W = 64                           # 'p64' patches, matching the pretrained backbone
    key = jax.random.PRNGKey(0)
    kx, kp = jax.random.split(key)
    x = jax.random.normal(kx, (2, in_channels, H, W), jnp.float32)   # NCHW, like PyTorch
    kps = jax.random.split(kp, 3)
    params = {
        "stem":  _init_res_block(kps[0], in_channels, base_channel),
        "down1": _init_res_block(kps[1], base_channel, 2 * base_channel),
        "down2": _init_res_block(kps[2], 2 * base_channel, 4 * base_channel),
    }

    _ = _roll_sign()                     # probe once, outside of jit
    fwd = jax.jit(encoder_forward)
    out, feats = fwd(x, params)
    jax.block_until_ready(out)
    jax.block_until_ready(feats)

    out_ref, feats_ref = encoder_forward_ref(x, params)
    np.testing.assert_allclose(np.asarray(out), np.asarray(out_ref), rtol=1e-5, atol=2e-5)
    for a, b in zip(feats, feats_ref):
        np.testing.assert_allclose(np.asarray(a), np.asarray(b), rtol=1e-5, atol=2e-5)

    assert out.shape == (2, 4 * base_channel, H // 4, W // 4)
    assert feats[0].shape == (2, base_channel, H, W)
    assert feats[1].shape == (2, 2 * base_channel, H // 2, W // 2)
    assert feats[2].shape == (2, 4 * base_channel, H // 4, W // 4)
    print("KERNEL_OK")
</pallas_src>

<mosaic_0001>
module attributes {stable_mosaic.version = 11 : i64} {
  func.func @kernel(%arg0: memref<8x128xf32, #tpu.memory_space<vmem>>, %arg1: memref<8x128xf32, #tpu.memory_space<vmem>>) attributes {dimension_semantics = [], scalar_prefetch = 0 : i64, scratch_operands = 0 : i64, tpu.core_type = #tpu.core_type<tc>} {
    %c0 = arith.constant 0 : index
    %c0_0 = arith.constant 0 : index
    %0 = vector.load %arg0[%c0, %c0_0] : memref<8x128xf32, #tpu.memory_space<vmem>>, vector<8x128xf32>
    %c1_i32 = arith.constant 1 : i32
    %1 = tpu.dynamic_rotate %0 by %c1_i32 dim 1 : vector<8x128xf32>, i32 -> vector<8x128xf32>
    %c0_1 = arith.constant 0 : index
    %c0_2 = arith.constant 0 : index
    %2 = vector.load %arg1[%c0_1, %c0_2] : memref<8x128xf32, #tpu.memory_space<vmem>>, vector<8x128xf32>
    tpu.vector_store %arg1[%c0_1, %c0_2], %1 {strides = array<i32>} : memref<8x128xf32, #tpu.memory_space<vmem>>, vector<8x128xf32>,
    return
  }
}

</mosaic_0001>

<llo_original>
// kernel: tpu_custom_call.1
$region0: #{tpu_custom_call.1}
  #allocation0 [shape = 'u32[]', space=smem, size = 0x4, offset = 0x4, fixed_abs, tag = 'smem constant byte address 0x4 - core index']
  #allocation1 [shape = 'u32[72,128]{1,0:T(1,128)}', space=vmem, size = 0x9000, scoped, tag = 'internal scratch']
  %s0 = inlined_call_operand.hbm [shape: f32[8,128], index: 0, kind: input, shape index: {}]
  %s1 = inlined_call_operand.hbm [shape: f32[8,128], index: 1, kind: output, shape index: {}]
  %s2 = sld [smem:[#allocation0]]
  $region18: #{tpu_custom_call.1} parent=0
    _
  %s4 = ssub.s32 1, %s2
  %s5 = scalar_select 0, %s4, %s2
  $region1: #{tpu_custom_call.1} parent=0
    #allocation2 [shape = 'u8[4096]{0}', space=vmem, size = 0x1000, scoped, tag = 'input window, operand 0, single buffered']
    #allocation3 [shape = 's32[1]{0}', space=sflag, size = 0x4, scoped, tag = 'scoped memory for tpu_custom_call.1']
    #allocation4 [shape = 's32[1]{0}', space=sflag, size = 0x4, scoped, tag = 'scoped memory for tpu_custom_call.1']
    #allocation5 [shape = 'u8[4096]{0}', space=vmem, size = 0x1000, scoped, tag = 'output window, operand 0, single buffered']
    %6 = vsyncpa [#allocation3], 0
    %7 = vsyncpa [#allocation4], 0
    // Predicated region
    $region2: #{tpu_custom_call.1} parent=1 // pred_check
      _
    $region3: #{tpu_custom_call.1} parent=1 // pred_check_branch
      %9 = sbr.rel (0) target = $region5
    $region4: #{tpu_custom_call.1} parent=1 // pred_region
      %11 = vsyncadd [#allocation3], 0
      %s13 = sshll.u32 %s0, 4
      %s14 = int_to_ptr.hbm [resolvable:$true] %s13
      %s15 = sshll.u32 [#allocation2], 4
      %s16 = int_to_ptr.vmem [resolvable:$true] %s15
      %18 = dma.hbm_to_vmem [thread:$0]  %s14, 128, %s16, [#allocation3]
    $region5: #{tpu_custom_call.1} parent=1 // pred_fallthru
      _
    // Predicated region
    $region6: #{tpu_custom_call.1} parent=1 // pred_check
      _
    $region7: #{tpu_custom_call.1} parent=1 // pred_check_branch
      %20 = sbr.rel (0) target = $region9
    $region8: #{tpu_custom_call.1} parent=1 // pred_region
      %22 = dma.done [#allocation3], 128
    $region9: #{tpu_custom_call.1} parent=1 // pred_fallthru
      _
    %v23 = vld [vmem:[#allocation2] sm:$0xff]
    %24 = vrot.lane.b32.xlu0 %v23, 1
    %v25 = vpop.permute.xlu0 %24
    %26 = vst [vmem:[#allocation5] sm:$0xff] %v25
    // Predicated region
    $region10: #{tpu_custom_call.1} parent=1 // pred_check
      _
    $region11: #{tpu_custom_call.1} parent=1 // pred_check_branch
      %28 = sbr.rel (0) target = $region13
    $region12: #{tpu_custom_call.1} parent=1 // pred_region
      %30 = vsyncadd [#allocation4], 0
      %s32 = sshll.u32 [#allocation5], 4
      %s33 = int_to_ptr.vmem [resolvable:$true] %s32
      %s34 = sshll.u32 %s1, 4
      %s35 = int_to_ptr.hbm [resolvable:$true] %s34
      %37 = dma.vmem_to_hbm [thread:$0]  %s33, 128, %s35, [#allocation4]
    $region13: #{tpu_custom_call.1} parent=1 // pred_fallthru
      _
    // Predicated region
    $region14: #{tpu_custom_call.1} parent=1 // pred_check
      _
    $region15: #{tpu_custom_call.1} parent=1 // pred_check_branch
      %39 = sbr.rel (0) target = $region17
    $region16: #{tpu_custom_call.1} parent=1 // pred_region
      %41 = dma.done [#allocation4], 128
    $region17: #{tpu_custom_call.1} parent=1 // pred_fallthru
      _
    %42 = vsyncpa [#allocation3], 1
    %43 = vsyncpa [#allocation4], 1

</llo_original>
